<compile_context>
chip_gen: v5e
topology: v5e:2x2
jax: 0.10.0
libtpu: 0.0.40
codegen_flags: <defaults>
</compile_context>

<pallas_src>
import jax
import jax.numpy as jnp
from jax.experimental import pallas as pl
from jax.experimental.pallas import tpu as pltpu

D_IN = 128          # data_size['metabolomics'] (demo choice, lane-aligned)
H1 = 256
H2 = 64
H2_PAD = 128        # pad fc2 width to one full 128-lane vreg
N_CLASS = 10        # data_size['class_num']
N_CLASS_PAD = 128   # pad classifier width so output stores are lane-dense
MAX_TILE_B = 1024   # upper bound on the batch tile (VMEM use still < ~3 MiB)
MIN_SPLIT_B = 128   # below this a single grid step is cheaper than two


def _mlp_kernel(x_ref, w1_ref, b1_ref, w2_ref, b2_ref, w3_ref, b3_ref, o_ref):
    # x arrives as f32 and is cast to bf16 in-kernel (VPU slack is free; this
    # avoids a separate wrapper-side HBM cast pass over x).
    x = x_ref[...].astype(jnp.bfloat16)                            # (tile_b, D_IN)

    # fc1 + leaky_relu(0.2): bf16 operands, f32 accumulate, f32 activations.
    h1 = jnp.dot(x, w1_ref[...], preferred_element_type=jnp.float32) + b1_ref[...]
    h1 = jnp.maximum(h1, 0.2 * h1)                                 # leaky_relu, 1 vmax

    # fc2 (lane-padded to 128) + sigmoid.
    h2 = jnp.dot(h1.astype(jnp.bfloat16), w2_ref[...],
                 preferred_element_type=jnp.float32) + b2_ref[...]
    h2 = jax.nn.sigmoid(h2)

    # fc3: output padded to 128 lanes. Rows H2:128 and cols N_CLASS:128 of the
    # padded w3/b3 are zero, so the first N_CLASS logits equal the unpadded
    # result even though sigmoid(0) = 0.5 in the padded h2 columns.
    out = jnp.dot(h2.astype(jnp.bfloat16), w3_ref[...],
                  preferred_element_type=jnp.float32) + b3_ref[...]
    o_ref[...] = out.astype(o_ref.dtype)                           # bf16 writeback


def pack_params(params):
    """One-time host-side prep: bf16 weights, lane-padded fc2/fc3."""
    bf = jnp.bfloat16
    w1 = params["w1"].astype(bf)                                   # (D_IN, H1)
    b1 = params["b1"].astype(jnp.float32)                          # (1, H1)
    w2 = jnp.zeros((H1, H2_PAD), bf).at[:, :H2].set(params["w2"].astype(bf))
    b2 = jnp.zeros((1, H2_PAD), jnp.float32).at[:, :H2].set(params["b2"])
    w3 = jnp.zeros((H2_PAD, N_CLASS_PAD), bf).at[:H2, :N_CLASS].set(
        params["w3"].astype(bf))
    b3 = jnp.zeros((1, N_CLASS_PAD), jnp.float32).at[:, :N_CLASS].set(params["b3"])
    return {"w1": w1, "b1": b1, "w2": w2, "b2": b2, "w3": w3, "b3": b3}


def _round_up(v, m):
    return ((v + m - 1) // m) * m


def _choose_tile_b(batch):
    """Adaptive batch tile: tight for small batches, >= 2 grid steps when big."""
    if batch < MIN_SPLIT_B:
        return max(16, _round_up(batch, 16))          # single tile, no dead 256-row pad
    half = -(-batch // 2)                             # ceil(batch / 2)
    return min(MAX_TILE_B, _round_up(half, 16))       # >= 2 steps -> both v7x TCs


@jax.jit
def metabolomics_classifier_forward(x, packed):
    """x: (B, D_IN) float32. packed: output of pack_params. Returns (B, N_CLASS) bf16."""
    B, d = x.shape
    assert d == D_IN

    tile_b = _choose_tile_b(B)
    b_pad = _round_up(B, tile_b)
    if b_pad != B:
        # Fused inside this jit; at most tile_b-1 dead rows (<= 15 for small B).
        x = jnp.pad(x, ((0, b_pad - B), (0, 0)))
    grid = (b_pad // tile_b,)

    # Advisory cost estimate so XLA overlaps this tiny, overhead-bound call.
    flops = 2 * b_pad * (D_IN * H1 + H1 * H2_PAD + H2_PAD * N_CLASS_PAD)
    bytes_accessed = (b_pad * D_IN * 4                                   # x (f32 in)
                      + (D_IN * H1 + H1 * H2_PAD + H2_PAD * N_CLASS_PAD) * 2  # bf16 W
                      + (H1 + H2_PAD + N_CLASS_PAD) * 4                 # f32 biases
                      + b_pad * N_CLASS_PAD * 2)                        # bf16 logits
    cost = pl.CostEstimate(flops=flops,
                           transcendentals=b_pad * H2_PAD,              # sigmoid exps
                           bytes_accessed=bytes_accessed)

    # Weights/biases: full-array blocks with a constant block index, so the
    # pipeline DMAs them exactly once and reuses them every grid step.
    def rep(shape):
        return pl.BlockSpec(shape, lambda i: (0,) * len(shape))

    out = pl.pallas_call(
        _mlp_kernel,
        out_shape=jax.ShapeDtypeStruct((b_pad, N_CLASS_PAD), jnp.bfloat16),
        grid_spec=pltpu.PrefetchScalarGridSpec(
            num_scalar_prefetch=0,
            grid=grid,
            in_specs=[
                pl.BlockSpec((tile_b, D_IN), lambda i: (i, 0)),     # x tile (f32)
                rep((D_IN, H1)), rep((1, H1)),                      # fc1
                rep((H1, H2_PAD)), rep((1, H2_PAD)),                # fc2 (padded)
                rep((H2_PAD, N_CLASS_PAD)), rep((1, N_CLASS_PAD)),  # fc3 (padded)
            ],
            out_specs=pl.BlockSpec((tile_b, N_CLASS_PAD), lambda i: (i, 0)),
        ),
        compiler_params=pltpu.CompilerParams(
            dimension_semantics=("parallel",)),   # batch axis -> megacore shard
        cost_estimate=cost,
    )(x, packed["w1"], packed["b1"], packed["w2"], packed["b2"],
      packed["w3"], packed["b3"])

    # Slice stays inside this jit (no standalone HBM round-trip dispatch).
    return out[:B, :N_CLASS]


def init_params(key):
    """Deterministic synthetic parameters (PyTorch-like uniform fan-in init)."""
    ks = jax.random.split(key, 6)

    def linear(kw, kb, fan_in, fan_out):
        bound = 1.0 / jnp.sqrt(fan_in)
        # stored transposed: (in, out) so the kernel computes x @ W + b
        w = jax.random.uniform(kw, (fan_in, fan_out), jnp.float32, -bound, bound)
        b = jax.random.uniform(kb, (1, fan_out), jnp.float32, -bound, bound)
        return w, b

    w1, b1 = linear(ks[0], ks[1], D_IN, H1)
    w2, b2 = linear(ks[2], ks[3], H1, H2)
    w3, b3 = linear(ks[4], ks[5], H2, N_CLASS)
    return {"w1": w1, "b1": b1, "w2": w2, "b2": b2, "w3": w3, "b3": b3}


def reference_forward(x, p):
    """Pure-JAX reference mirroring the kernel's bf16-operand / f32-accumulate math."""
    bf = jnp.bfloat16

    def mm(a, w):
        return jnp.dot(a.astype(bf), w.astype(bf),
                       preferred_element_type=jnp.float32)

    h1 = mm(x, p["w1"]) + p["b1"]
    h1 = jnp.where(h1 > 0, h1, 0.2 * h1)
    h2 = jax.nn.sigmoid(mm(h1, p["w2"]) + p["b2"])
    return mm(h2, p["w3"]) + p["b3"]


if __name__ == "__main__":
    key = jax.random.PRNGKey(0)
    k_x1, k_x2, k_p = jax.random.split(key, 3)

    params = init_params(k_p)
    packed = pack_params(params)

    # Small ragged batch: adaptive tiling pads only to 48 rows (not 256).
    x_small = jax.random.normal(k_x1, (37, D_IN), jnp.float32)
    out_small = jax.block_until_ready(
        metabolomics_classifier_forward(x_small, packed))
    ref_small = reference_forward(x_small, params)
    assert out_small.shape == (37, N_CLASS)
    # bf16 logits writeback -> ~0.4% relative rounding; tolerance set accordingly.
    assert jnp.allclose(out_small.astype(jnp.float32), ref_small,
                        atol=2e-2, rtol=2e-2), "mismatch (batch=37)"

    # Larger batch: splits into 2 grid steps (tile_b=160), so v7x can use both
    # TensorCores; still a tiny amount of data.
    x_big = jax.random.normal(k_x2, (300, D_IN), jnp.float32)
    out_big = jax.block_until_ready(
        metabolomics_classifier_forward(x_big, packed))
    ref_big = reference_forward(x_big, params)
    assert out_big.shape == (300, N_CLASS)
    assert jnp.allclose(out_big.astype(jnp.float32), ref_big,
                        atol=2e-2, rtol=2e-2), "mismatch (batch=300)"

    # TODO(synk): get_loss (log_softmax + nll_loss) is training-only and not part
    # of the forward pass; not implemented as a kernel.
    print("KERNEL_OK")
</pallas_src>

<mosaic_0001>
module attributes {stable_mosaic.version = 11 : i64} {
  func.func @_mlp_kernel(%arg0: i32, %arg1: memref<48x128xf32, #tpu.memory_space<vmem>>, %arg2: memref<128x256xbf16, #tpu.memory_space<vmem>>, %arg3: memref<1x256xf32, #tpu.memory_space<vmem>>, %arg4: memref<256x128xbf16, #tpu.memory_space<vmem>>, %arg5: memref<1x128xf32, #tpu.memory_space<vmem>>, %arg6: memref<128x128xbf16, #tpu.memory_space<vmem>>, %arg7: memref<1x128xf32, #tpu.memory_space<vmem>>, %arg8: memref<48x128xbf16, #tpu.memory_space<vmem>>) attributes {dimension_semantics = [#tpu.dimension_semantics<parallel>], iteration_bounds = array<i64: 1>, scalar_prefetch = 0 : i64, scratch_operands = 0 : i64, tpu.core_type = #tpu.core_type<tc>, window_params = [{transform_indices = @transform_0, window_bounds = array<i64: 48, 128>}, {pipeline_mode = #tpu.pipeline_mode<synchronous>, transform_indices = @transform_1, window_bounds = array<i64: 128, 256>}, {pipeline_mode = #tpu.pipeline_mode<synchronous>, transform_indices = @transform_2, window_bounds = array<i64: 1, 256>}, {pipeline_mode = #tpu.pipeline_mode<synchronous>, transform_indices = @transform_3, window_bounds = array<i64: 256, 128>}, {pipeline_mode = #tpu.pipeline_mode<synchronous>, transform_indices = @transform_4, window_bounds = array<i64: 1, 128>}, {pipeline_mode = #tpu.pipeline_mode<synchronous>, transform_indices = @transform_5, window_bounds = array<i64: 128, 128>}, {pipeline_mode = #tpu.pipeline_mode<synchronous>, transform_indices = @transform_6, window_bounds = array<i64: 1, 128>}, {transform_indices = @transform_7, window_bounds = array<i64: 48, 128>}]} {
    %c0 = arith.constant 0 : index
    %c0_0 = arith.constant 0 : index
    %0 = vector.load %arg1[%c0, %c0_0] : memref<48x128xf32, #tpu.memory_space<vmem>>, vector<48x128xf32>
    %1 = arith.truncf %0 : vector<48x128xf32> to vector<48x128xbf16>
    %c0_1 = arith.constant 0 : index
    %c0_2 = arith.constant 0 : index
    %2 = vector.load %arg2[%c0_1, %c0_2] : memref<128x256xbf16, #tpu.memory_space<vmem>>, vector<128x256xbf16>
    %cst = arith.constant dense<0.000000e+00> : vector<48x256xf32>
    %3 = tpu.matmul %1, %2, %cst {dimension_numbers = #tpu.dot_dimension_numbers<[1], [0], [0], [1], [0, 0, 1, 1], [], []>} : vector<48x128xbf16>, vector<128x256xbf16>, vector<48x256xf32> -> vector<48x256xf32>
    %c0_3 = arith.constant 0 : index
    %c0_4 = arith.constant 0 : index
    %4 = vector.load %arg3[%c0_3, %c0_4] : memref<1x256xf32, #tpu.memory_space<vmem>>, vector<1x256xf32>
    %5 = vector.broadcast %4 : vector<1x256xf32> to vector<48x256xf32>
    %6 = arith.addf %3, %5 : vector<48x256xf32>
    %cst_5 = arith.constant 2.000000e-01 : f32
    %7 = vector.broadcast %cst_5 : f32 to vector<48x256xf32>
    %8 = arith.mulf %7, %6 : vector<48x256xf32>
    %9 = arith.maximumf %6, %8 : vector<48x256xf32>
    %10 = arith.truncf %9 : vector<48x256xf32> to vector<48x256xbf16>
    %c0_6 = arith.constant 0 : index
    %c0_7 = arith.constant 0 : index
    %11 = vector.load %arg4[%c0_6, %c0_7] : memref<256x128xbf16, #tpu.memory_space<vmem>>, vector<256x128xbf16>
    %cst_8 = arith.constant dense<0.000000e+00> : vector<48x128xf32>
    %12 = tpu.matmul %10, %11, %cst_8 {dimension_numbers = #tpu.dot_dimension_numbers<[1], [0], [0], [1], [0, 0, 1, 1], [], []>} : vector<48x256xbf16>, vector<256x128xbf16>, vector<48x128xf32> -> vector<48x128xf32>
    %c0_9 = arith.constant 0 : index
    %c0_10 = arith.constant 0 : index
    %13 = vector.load %arg5[%c0_9, %c0_10] : memref<1x128xf32, #tpu.memory_space<vmem>>, vector<1x128xf32>
    %14 = vector.broadcast %13 : vector<1x128xf32> to vector<48x128xf32>
    %15 = arith.addf %12, %14 : vector<48x128xf32>
    %16 = arith.negf %15 : vector<48x128xf32>
    %17 = math.exp %16 : vector<48x128xf32>
    %cst_11 = arith.constant 1.000000e+00 : f32
    %18 = vector.broadcast %cst_11 : f32 to vector<48x128xf32>
    %19 = arith.addf %18, %17 : vector<48x128xf32>
    %20 = arith.divf %18, %19 : vector<48x128xf32>
    %21 = arith.truncf %20 : vector<48x128xf32> to vector<48x128xbf16>
    %c0_12 = arith.constant 0 : index
    %c0_13 = arith.constant 0 : index
    %22 = vector.load %arg6[%c0_12, %c0_13] : memref<128x128xbf16, #tpu.memory_space<vmem>>, vector<128x128xbf16>
    %cst_14 = arith.constant dense<0.000000e+00> : vector<48x128xf32>
    %23 = tpu.matmul %21, %22, %cst_14 {dimension_numbers = #tpu.dot_dimension_numbers<[1], [0], [0], [1], [0, 0, 1, 1], [], []>} : vector<48x128xbf16>, vector<128x128xbf16>, vector<48x128xf32> -> vector<48x128xf32>
    %c0_15 = arith.constant 0 : index
    %c0_16 = arith.constant 0 : index
    %24 = vector.load %arg7[%c0_15, %c0_16] : memref<1x128xf32, #tpu.memory_space<vmem>>, vector<1x128xf32>
    %25 = vector.broadcast %24 : vector<1x128xf32> to vector<48x128xf32>
    %26 = arith.addf %23, %25 : vector<48x128xf32>
    %27 = arith.truncf %26 : vector<48x128xf32> to vector<48x128xbf16>
    %c0_17 = arith.constant 0 : index
    %c0_18 = arith.constant 0 : index
    %28 = vector.load %arg8[%c0_17, %c0_18] : memref<48x128xbf16, #tpu.memory_space<vmem>>, vector<48x128xbf16>
    tpu.vector_store %arg8[%c0_17, %c0_18], %27 {strides = array<i32>} : memref<48x128xbf16, #tpu.memory_space<vmem>>, vector<48x128xbf16>,
    return
  }
  func.func @transform_0(%arg0: i32) -> (i32, i32) {
    %c0_i32 = arith.constant 0 : i32
    %c0_i32_0 = arith.constant 0 : i32
    return %arg0, %c0_i32 : i32, i32
  }
  func.func @transform_1(%arg0: i32) -> (i32, i32) {
    %c0_i32 = arith.constant 0 : i32
    %c0_i32_0 = arith.constant 0 : i32
    %c0_i32_1 = arith.constant 0 : i32
    return %c0_i32, %c0_i32_0 : i32, i32
  }
  func.func @transform_2(%arg0: i32) -> (i32, i32) {
    %c0_i32 = arith.constant 0 : i32
    %c0_i32_0 = arith.constant 0 : i32
    %c0_i32_1 = arith.constant 0 : i32
    return %c0_i32, %c0_i32_0 : i32, i32
  }
  func.func @transform_3(%arg0: i32) -> (i32, i32) {
    %c0_i32 = arith.constant 0 : i32
    %c0_i32_0 = arith.constant 0 : i32
    %c0_i32_1 = arith.constant 0 : i32
    return %c0_i32, %c0_i32_0 : i32, i32
  }
  func.func @transform_4(%arg0: i32) -> (i32, i32) {
    %c0_i32 = arith.constant 0 : i32
    %c0_i32_0 = arith.constant 0 : i32
    %c0_i32_1 = arith.constant 0 : i32
    return %c0_i32, %c0_i32_0 : i32, i32
  }
  func.func @transform_5(%arg0: i32) -> (i32, i32) {
    %c0_i32 = arith.constant 0 : i32
    %c0_i32_0 = arith.constant 0 : i32
    %c0_i32_1 = arith.constant 0 : i32
    return %c0_i32, %c0_i32_0 : i32, i32
  }
  func.func @transform_6(%arg0: i32) -> (i32, i32) {
    %c0_i32 = arith.constant 0 : i32
    %c0_i32_0 = arith.constant 0 : i32
    %c0_i32_1 = arith.constant 0 : i32
    return %c0_i32, %c0_i32_0 : i32, i32
  }
  func.func @transform_7(%arg0: i32) -> (i32, i32) {
    %c0_i32 = arith.constant 0 : i32
    %c0_i32_0 = arith.constant 0 : i32
    return %arg0, %c0_i32 : i32, i32
  }
}

</mosaic_0001>

<llo_original>
// kernel: metabolomics_classifier_forward.1
$region0: #{metabolomics_classifier_forward.1}
  #allocation0 [shape = 'u32[]', space=smem, size = 0x4, offset = 0x4, fixed_abs, tag = 'smem constant byte address 0x4 - core index']
  #allocation1 [shape = 'u32[72,128]{1,0:T(1,128)}', space=vmem, size = 0x9000, scoped, tag = 'internal scratch']
  %s0 = inlined_call_operand.vmem [shape: f32[48,128], index: 0, kind: input, shape index: {}]
  %s1 = inlined_call_operand.hbm [shape: bf16[128,256], index: 1, kind: input, shape index: {}]
  %s2 = inlined_call_operand.vmem [shape: f32[1,256], index: 2, kind: input, shape index: {}]
  %s3 = inlined_call_operand.hbm [shape: bf16[256,128], index: 3, kind: input, shape index: {}]
  %s4 = inlined_call_operand.vmem [shape: f32[1,128], index: 4, kind: input, shape index: {}]
  %s5 = inlined_call_operand.vmem [shape: bf16[128,128], index: 5, kind: input, shape index: {}]
  %s6 = inlined_call_operand.vmem [shape: f32[1,128], index: 6, kind: input, shape index: {}]
  %s7 = inlined_call_operand.vmem [shape: bf16[48,128], index: 7, kind: output, shape index: {}]
  %s8 = sld [smem:[#allocation0]]
  $region46: #{metabolomics_classifier_forward.1} parent=0
    _
  %s10 = ssub.s32 1, %s8
  %s11 = scalar_select 0, %s10, %s8
  $region1: #{metabolomics_classifier_forward.1} parent=0
    #allocation2 [shape = 'u8[65536]{0}', space=vmem, size = 0x10000, scoped, tag = 'input window, operand 1, single buffered']
    #allocation3 [shape = 's32[1]{0}', space=sflag, size = 0x4, scoped, tag = 'scoped memory for metabolomics_classifier_forward.1']
    #allocation4 [shape = 'u8[65536]{0}', space=vmem, size = 0x10000, scoped, tag = 'input window, operand 3, single buffered']
    #allocation5 [shape = 's32[1]{0}', space=sflag, size = 0x4, scoped, tag = 'scoped memory for metabolomics_classifier_forward.1']
    %12 = vsyncpa [#allocation3], 0
    %13 = vsyncpa [#allocation5], 0
    // Predicated region
    $region2: #{metabolomics_classifier_forward.1} parent=1 // pred_check
      _
    $region3: #{metabolomics_classifier_forward.1} parent=1 // pred_check_branch
      %15 = sbr.rel (0) target = $region5
    $region4: #{metabolomics_classifier_forward.1} parent=1 // pred_region
      _
    $region5: #{metabolomics_classifier_forward.1} parent=1 // pred_fallthru
      _
    // Predicated region
    $region6: #{metabolomics_classifier_forward.1} parent=1 // pred_check
      _
    $region7: #{metabolomics_classifier_forward.1} parent=1 // pred_check_branch
      %17 = sbr.rel (0) target = $region9
    $region8: #{metabolomics_classifier_forward.1} parent=1 // pred_region
      %19 = vsyncadd [#allocation3], 0
      %s20 = sshll.u32 %s1, 4
      %s21 = int_to_ptr.hbm [resolvable:$true] %s20
      %s22 = sshll.u32 [#allocation2], 4
      %s23 = int_to_ptr.vmem [resolvable:$true] %s22
      %28 = dma.hbm_to_vmem [thread:$0]  %s21, 2048, %s23, [#allocation3], 128, 128, 8
    $region9: #{metabolomics_classifier_forward.1} parent=1 // pred_fallthru
      _
    // Predicated region
    $region10: #{metabolomics_classifier_forward.1} parent=1 // pred_check
      _
    $region11: #{metabolomics_classifier_forward.1} parent=1 // pred_check_branch
      %30 = sbr.rel (0) target = $region13
    $region12: #{metabolomics_classifier_forward.1} parent=1 // pred_region
      _
    $region13: #{metabolomics_classifier_forward.1} parent=1 // pred_fallthru
      _
    // Predicated region
    $region14: #{metabolomics_classifier_forward.1} parent=1 // pred_check
      _
    $region15: #{metabolomics_classifier_forward.1} parent=1 // pred_check_branch
      %32 = sbr.rel (0) target = $region17
    $region16: #{metabolomics_classifier_forward.1} parent=1 // pred_region
      %34 = vsyncadd [#allocation5], 0
      %s35 = sshll.u32 %s3, 4
      %s36 = int_to_ptr.hbm [resolvable:$true] %s35
      %s37 = sshll.u32 [#allocation4], 4
      %s38 = int_to_ptr.vmem [resolvable:$true] %s37
      %43 = dma.hbm_to_vmem [thread:$0]  %s36, 2048, %s38, [#allocation5], 64, 64, 4
    $region17: #{metabolomics_classifier_forward.1} parent=1 // pred_fallthru
      _
    // Predicated region
    $region18: #{metabolomics_classifier_forward.1} parent=1 // pred_check
      _
    $region19: #{metabolomics_classifier_forward.1} parent=1 // pred_check_branch
      %45 = sbr.rel (0) target = $region21
    $region20: #{metabolomics_classifier_forward.1} parent=1 // pred_region
      _
    $region21: #{metabolomics_classifier_forward.1} parent=1 // pred_fallthru
      _
    // Predicated region
    $region22: #{metabolomics_classifier_forward.1} parent=1 // pred_check
      _
    $region23: #{metabolomics_classifier_forward.1} parent=1 // pred_check_branch
      %47 = sbr.rel (0) target = $region25
    $region24: #{metabolomics_classifier_forward.1} parent=1 // pred_region
      _
    $region25: #{metabolomics_classifier_forward.1} parent=1 // pred_fallthru
      _
    // Predicated region
    $region26: #{metabolomics_classifier_forward.1} parent=1 // pred_check
      _
    $region27: #{metabolomics_classifier_forward.1} parent=1 // pred_check_branch
      %49 = sbr.rel (0) target = $region29
    $region28: #{metabolomics_classifier_forward.1} parent=1 // pred_region
      _
    $region29: #{metabolomics_classifier_forward.1} parent=1 // pred_fallthru
      _
    // Predicated region
    $region30: #{metabolomics_classifier_forward.1} parent=1 // pred_check
      _
    $region31: #{metabolomics_classifier_forward.1} parent=1 // pred_check_branch
      %51 = sbr.rel (0) target = $region33
    $region32: #{metabolomics_classifier_forward.1} parent=1 // pred_region
      %53 = dma.done [#allocation3], 2048
    $region33: #{metabolomics_classifier_forward.1} parent=1 // pred_fallthru
      _
    // Predicated region
    $region34: #{metabolomics_classifier_forward.1} parent=1 // pred_check
      _
    $region35: #{metabolomics_classifier_forward.1} parent=1 // pred_check_branch
      %55 = sbr.rel (0) target = $region37
    $region36: #{metabolomics_classifier_forward.1} parent=1 // pred_region
      %57 = dma.done [#allocation5], 2048
    $region37: #{metabolomics_classifier_forward.1} parent=1 // pred_fallthru
      _
    %v58 = vld [vmem:[%s0] sm:$0xff]
    %v59 = vld [vmem:[%s0 + $0x8] sm:$0xff]
    %v60 = vld [vmem:[%s0 + $0x10] sm:$0xff]
    %v61 = vld [vmem:[%s0 + $0x18] sm:$0xff]
    %v62 = vld [vmem:[%s0 + $0x20] sm:$0xff]
    %v63 = vld [vmem:[%s0 + $0x28] sm:$0xff]
    %v64 = vpack.c.bf16 %v59, %v58
    %v65 = vpack.c.bf16 %v61, %v60
    %v66 = vpack.c.bf16 %v63, %v62
    %v67 = vld [vmem:[#allocation2] sm:$0xff]
    %v68 = vld [vmem:[#allocation2 + $0x8] sm:$0xff]
    %v69 = vld [vmem:[#allocation2 + $0x10] sm:$0xff]
    %v70 = vld [vmem:[#allocation2 + $0x18] sm:$0xff]
    %v71 = vld [vmem:[#allocation2 + $0x20] sm:$0xff]
    %v72 = vld [vmem:[#allocation2 + $0x28] sm:$0xff]
    %v73 = vld [vmem:[#allocation2 + $0x30] sm:$0xff]
    %v74 = vld [vmem:[#allocation2 + $0x38] sm:$0xff]
    %v75 = vld [vmem:[#allocation2 + $0x40] sm:$0xff]
    %v76 = vld [vmem:[#allocation2 + $0x48] sm:$0xff]
    %v77 = vld [vmem:[#allocation2 + $0x50] sm:$0xff]
    %v78 = vld [vmem:[#allocation2 + $0x58] sm:$0xff]
    %v79 = vld [vmem:[#allocation2 + $0x60] sm:$0xff]
    %v80 = vld [vmem:[#allocation2 + $0x68] sm:$0xff]
    %v81 = vld [vmem:[#allocation2 + $0x70] sm:$0xff]
    %v82 = vld [vmem:[#allocation2 + $0x78] sm:$0xff]
    %v83 = vld [vmem:[%s2] sm:$0x3]
    %v85 = vperm.slane %v83, 0
    %v86 = vperm.slane %v83, 1
    %v105 = vunpack.c.l.b16 %v67
    %v106 = vunpack.c.h.b16 %v67
    %v107 = vunpack.c.l.b16 %v68
    %v108 = vunpack.c.h.b16 %v68
    %v109 = vunpack.c.l.b16 %v69
    %v110 = vunpack.c.h.b16 %v69
    %v111 = vunpack.c.l.b16 %v70
    %v112 = vunpack.c.h.b16 %v70
    %v113 = vunpack.c.l.b16 %v71
    %v114 = vunpack.c.h.b16 %v71
    %v115 = vunpack.c.l.b16 %v72
    %v116 = vunpack.c.h.b16 %v72
    %v117 = vunpack.c.l.b16 %v73
    %v118 = vunpack.c.h.b16 %v73
    %v119 = vunpack.c.l.b16 %v74
    %v120 = vunpack.c.h.b16 %v74
    %v121 = vunpack.c.l.b16 %v75
    %v122 = vunpack.c.h.b16 %v75
    %v123 = vunpack.c.l.b16 %v76
    %v124 = vunpack.c.h.b16 %v76
    %v125 = vunpack.c.l.b16 %v77
    %v126 = vunpack.c.h.b16 %v77
    %v127 = vunpack.c.l.b16 %v78
    %v128 = vunpack.c.h.b16 %v78
    %v129 = vunpack.c.l.b16 %v79
    %v130 = vunpack.c.h.b16 %v79
    %v131 = vunpack.c.l.b16 %v80
    %v132 = vunpack.c.h.b16 %v80
    %v133 = vunpack.c.l.b16 %v81
    %v134 = vunpack.c.h.b16 %v81
    %v135 = vunpack.c.l.b16 %v82
    %v136 = vunpack.c.h.b16 %v82
    %v137 = vpack.c.b16 %v107, %v105
    %v138 = vpack.c.b16 %v108, %v106
    %v139 = vpack.c.b16 %v111, %v109
    %v140 = vpack.c.b16 %v112, %v110
    %v141 = vpack.c.b16 %v115, %v113
    %v142 = vpack.c.b16 %v116, %v114
    %v143 = vpack.c.b16 %v119, %v117
    %v144 = vpack.c.b16 %v120, %v118
    %v145 = vpack.c.b16 %v123, %v121
    %v146 = vpack.c.b16 %v124, %v122
    %v147 = vpack.c.b16 %v127, %v125
    %v148 = vpack.c.b16 %v128, %v126
    %v149 = vpack.c.b16 %v131, %v129
    %v150 = vpack.c.b16 %v132, %v130
    %v151 = vpack.c.b16 %v135, %v133
    %v152 = vpack.c.b16 %v136, %v134
    %169 = vmatpush.bf16.msra.mxu0 %v151
    %170 = vmatpush.bf16.msra.mxu0 %v149
    %171 = vmatpush.bf16.msra.mxu0 %v147
    %172 = vmatpush.bf16.msra.mxu0 %v145
    %173 = vmatpush.bf16.msra.mxu0 %v143
    %174 = vmatpush.bf16.msra.mxu0 %v141
    %175 = vmatpush.bf16.msra.mxu0 %v139
    %176 = vmatpush.bf16.msra.mxu0 %v137
    %177 = vmatmul.bf16.gmra.mxu0 %v64
    %v178 = vpop.f32.mrf.mxu0
    %v179 = vadd.f32 %v85, %v178
    %v180 = vpop.f32.mrf.mxu0
    %v181 = vadd.f32 %v85, %v180
    %182 = vmatmul.bf16.gmra.mxu0 %v65
    %v183 = vpop.f32.mrf.mxu0
    %v184 = vadd.f32 %v85, %v183
    %v185 = vpop.f32.mrf.mxu0
    %v186 = vadd.f32 %v85, %v185
    %187 = vmatmul.bf16.gmra.mxu0 %v66
    %v188 = vpop.f32.mrf.mxu0
    %v189 = vadd.f32 %v85, %v188
    %v190 = vpop.f32.mrf.mxu0
    %v191 = vadd.f32 %v85, %v190
    %192 = vdwg.mxu0
    %193 = vmatpush.bf16.msra.mxu0 %v152
    %194 = vmatpush.bf16.msra.mxu0 %v150
    %195 = vmatpush.bf16.msra.mxu0 %v148
    %196 = vmatpush.bf16.msra.mxu0 %v146
    %197 = vmatpush.bf16.msra.mxu0 %v144
    %198 = vmatpush.bf16.msra.mxu0 %v142
    %199 = vmatpush.bf16.msra.mxu0 %v140
    %200 = vmatpush.bf16.msra.mxu0 %v138
    %201 = vmatmul.bf16.gmra.mxu0 %v64
    %v202 = vpop.f32.mrf.mxu0
    %v203 = vadd.f32 %v86, %v202
    %v204 = vpop.f32.mrf.mxu0
    %v205 = vadd.f32 %v86, %v204
    %206 = vmatmul.bf16.gmra.mxu0 %v65
    %v207 = vpop.f32.mrf.mxu0
    %v208 = vadd.f32 %v86, %v207
    %v209 = vpop.f32.mrf.mxu0
    %v210 = vadd.f32 %v86, %v209
    %211 = vmatmul.bf16.gmra.mxu0 %v66
    %v212 = vpop.f32.mrf.mxu0
    %v213 = vadd.f32 %v86, %v212
    %v214 = vpop.f32.mrf.mxu0
    %v215 = vadd.f32 %v86, %v214
    %216 = vdwg.mxu0
    %v217 = vmul.f32 %v179, 0.2
    %v218 = vmul.f32 %v203, 0.2
    %v219 = vmul.f32 %v181, 0.2
    %v220 = vmul.f32 %v205, 0.2
    %v221 = vmul.f32 %v184, 0.2
    %v222 = vmul.f32 %v208, 0.2
    %v223 = vmul.f32 %v186, 0.2
    %v224 = vmul.f32 %v210, 0.2
    %v225 = vmul.f32 %v189, 0.2
    %v226 = vmul.f32 %v213, 0.2
    %v227 = vmul.f32 %v191, 0.2
    %v228 = vmul.f32 %v215, 0.2
    %v229 = vmax.f32 %v179, %v217
    %v230 = vmax.f32 %v203, %v218
    %v231 = vmax.f32 %v181, %v219
    %v232 = vmax.f32 %v205, %v220
    %v233 = vmax.f32 %v184, %v221
    %v234 = vmax.f32 %v208, %v222
    %v235 = vmax.f32 %v186, %v223
    %v236 = vmax.f32 %v210, %v224
    %v237 = vmax.f32 %v189, %v225
    %v238 = vmax.f32 %v213, %v226
    %v239 = vmax.f32 %v191, %v227
    %v240 = vmax.f32 %v215, %v228
    %v241 = vpack.c.bf16 %v231, %v229
    %v242 = vpack.c.bf16 %v232, %v230
    %v243 = vpack.c.bf16 %v235, %v233
    %v244 = vpack.c.bf16 %v236, %v234
    %v245 = vpack.c.bf16 %v239, %v237
    %v246 = vpack.c.bf16 %v240, %v238
    %v247 = vld [vmem:[#allocation4] sm:$0xf]
    %v248 = vld [vmem:[#allocation4 + $0x4] sm:$0xf]
    %v249 = vld [vmem:[#allocation4 + $0x8] sm:$0xf]
    %v250 = vld [vmem:[#allocation4 + $0xc] sm:$0xf]
    %v251 = vld [vmem:[#allocation4 + $0x10] sm:$0xf]
    %v252 = vld [vmem:[#allocation4 + $0x14] sm:$0xf]
    %v253 = vld [vmem:[#allocation4 + $0x18] sm:$0xf]
    %v254 = vld [vmem:[#allocation4 + $0x1c] sm:$0xf]
    %v255 = vld [vmem:[#allocation4 + $0x20] sm:$0xf]
    %v256 = vld [vmem:[#allocation4 + $0x24] sm:$0xf]
    %v257 = vld [vmem:[#allocation4 + $0x28] sm:$0xf]
    %v258 = vld [vmem:[#allocation4 + $0x2c] sm:$0xf]
    %v259 = vld [vmem:[#allocation4 + $0x30] sm:$0xf]
    %v260 = vld [vmem:[#allocation4 + $0x34] sm:$0xf]
    %v261 = vld [vmem:[#allocation4 + $0x38] sm:$0xf]
    %v262 = vld [vmem:[#allocation4 + $0x3c] sm:$0xf]
    %v263 = vld [vmem:[#allocation4 + $0x40] sm:$0xf]
    %v264 = vld [vmem:[#allocation4 + $0x44] sm:$0xf]
    %v265 = vld [vmem:[#allocation4 + $0x48] sm:$0xf]
    %v266 = vld [vmem:[#allocation4 + $0x4c] sm:$0xf]
    %v267 = vld [vmem:[#allocation4 + $0x50] sm:$0xf]
    %v268 = vld [vmem:[#allocation4 + $0x54] sm:$0xf]
    %v269 = vld [vmem:[#allocation4 + $0x58] sm:$0xf]
    %v270 = vld [vmem:[#allocation4 + $0x5c] sm:$0xf]
    %v271 = vld [vmem:[#allocation4 + $0x60] sm:$0xf]
    %v272 = vld [vmem:[#allocation4 + $0x64] sm:$0xf]
    %v273 = vld [vmem:[#allocation4 + $0x68] sm:$0xf]
    %v274 = vld [vmem:[#allocation4 + $0x6c] sm:$0xf]
    %v275 = vld [vmem:[#allocation4 + $0x70] sm:$0xf]
    %v276 = vld [vmem:[#allocation4 + $0x74] sm:$0xf]
    %v277 = vld [vmem:[#allocation4 + $0x78] sm:$0xf]
    %v278 = vld [vmem:[#allocation4 + $0x7c] sm:$0xf]
    %v279 = vld [vmem:[%s4] sm:$0x1]
    %v281 = vperm.slane %v279, 0
    %v315 = vunpack.c.l.b16 %v247
    %v316 = vunpack.c.l.b16 %v248
    %v317 = vunpack.c.l.b16 %v249
    %v318 = vunpack.c.l.b16 %v250
    %v319 = vunpack.c.l.b16 %v251
    %v320 = vunpack.c.l.b16 %v252
    %v321 = vunpack.c.l.b16 %v253
    %v322 = vunpack.c.l.b16 %v254
    %v323 = vunpack.c.l.b16 %v255
    %v324 = vunpack.c.l.b16 %v256
    %v325 = vunpack.c.l.b16 %v257
    %v326 = vunpack.c.l.b16 %v258
    %v327 = vunpack.c.l.b16 %v259
    %v328 = vunpack.c.l.b16 %v260
    %v329 = vunpack.c.l.b16 %v261
    %v330 = vunpack.c.l.b16 %v262
    %v331 = vunpack.c.l.b16 %v263
    %v332 = vunpack.c.l.b16 %v264
    %v333 = vunpack.c.l.b16 %v265
    %v334 = vunpack.c.l.b16 %v266
    %v335 = vunpack.c.l.b16 %v267
    %v336 = vunpack.c.l.b16 %v268
    %v337 = vunpack.c.l.b16 %v269
    %v338 = vunpack.c.l.b16 %v270
    %v339 = vunpack.c.l.b16 %v271
    %v340 = vunpack.c.l.b16 %v272
    %v341 = vunpack.c.l.b16 %v273
    %v342 = vunpack.c.l.b16 %v274
    %v343 = vunpack.c.l.b16 %v275
    %v344 = vunpack.c.l.b16 %v276
    %v345 = vunpack.c.l.b16 %v277
    %v346 = vunpack.c.l.b16 %v278
    %v347 = vpack.c.b16 %v316, %v315
    %v348 = vpack.c.b16 %v318, %v317
    %v349 = vpack.c.b16 %v320, %v319
    %v350 = vpack.c.b16 %v322, %v321
    %v351 = vpack.c.b16 %v324, %v323
    %v352 = vpack.c.b16 %v326, %v325
    %v353 = vpack.c.b16 %v328, %v327
    %v354 = vpack.c.b16 %v330, %v329
    %v355 = vpack.c.b16 %v332, %v331
    %v356 = vpack.c.b16 %v334, %v333
    %v357 = vpack.c.b16 %v336, %v335
    %v358 = vpack.c.b16 %v338, %v337
    %v359 = vpack.c.b16 %v340, %v339
    %v360 = vpack.c.b16 %v342, %v341
    %v361 = vpack.c.b16 %v344, %v343
    %v362 = vpack.c.b16 %v346, %v345
    %379 = vmatpush.bf16.msra.mxu0 %v354
    %380 = vmatpush.bf16.msra.mxu0 %v353
    %381 = vmatpush.bf16.msra.mxu0 %v352
    %382 = vmatpush.bf16.msra.mxu0 %v351
    %383 = vmatpush.bf16.msra.mxu0 %v350
    %384 = vmatpush.bf16.msra.mxu0 %v349
    %385 = vmatpush.bf16.msra.mxu0 %v348
    %386 = vmatpush.bf16.msra.mxu0 %v347
    %387 = vmatmul.bf16.gmra.mxu0 %v241
    %v388 = vpop.f32.mrf.mxu0
    %v389 = vadd.f32 %v281, %v388
    %v390 = vpop.f32.mrf.mxu0
    %v391 = vadd.f32 %v281, %v390
    %392 = vmatmul.bf16.gmra.mxu0 %v243
    %v393 = vpop.f32.mrf.mxu0
    %v394 = vadd.f32 %v281, %v393
    %v395 = vpop.f32.mrf.mxu0
    %v396 = vadd.f32 %v281, %v395
    %397 = vmatmul.bf16.gmra.mxu0 %v245
    %v398 = vpop.f32.mrf.mxu0
    %v399 = vadd.f32 %v281, %v398
    %v400 = vpop.f32.mrf.mxu0
    %v401 = vadd.f32 %v281, %v400
    %402 = vdwg.mxu0
    %403 = vmatpush.bf16.msra.mxu0 %v362
    %404 = vmatpush.bf16.msra.mxu0 %v361
    %405 = vmatpush.bf16.msra.mxu0 %v360
    %406 = vmatpush.bf16.msra.mxu0 %v359
    %407 = vmatpush.bf16.msra.mxu0 %v358
    %408 = vmatpush.bf16.msra.mxu0 %v357
    %409 = vmatpush.bf16.msra.mxu0 %v356
    %410 = vmatpush.bf16.msra.mxu0 %v355
    %411 = vmatmul.bf16.gmra.mxu0 %v242
    %v412 = vpop.f32.mrf.mxu0
    %v413 = vadd.f32 %v389, %v412
    %v414 = vpop.f32.mrf.mxu0
    %v415 = vadd.f32 %v391, %v414
    %416 = vmatmul.bf16.gmra.mxu0 %v244
    %v417 = vpop.f32.mrf.mxu0
    %v418 = vadd.f32 %v394, %v417
    %v419 = vpop.f32.mrf.mxu0
    %v420 = vadd.f32 %v396, %v419
    %421 = vmatmul.bf16.gmra.mxu0 %v246
    %v422 = vpop.f32.mrf.mxu0
    %v423 = vadd.f32 %v399, %v422
    %v424 = vpop.f32.mrf.mxu0
    %v425 = vadd.f32 %v401, %v424
    %426 = vdwg.mxu0
    %v427 = vxor.u32 %v413, 2147483648
    %v428 = vxor.u32 %v415, 2147483648
    %v429 = vxor.u32 %v418, 2147483648
    %v430 = vxor.u32 %v420, 2147483648
    %v431 = vxor.u32 %v423, 2147483648
    %v432 = vxor.u32 %v425, 2147483648
    %v433 = vmul.f32 %v427, 1.442695
    %v434 = vpow.pop %v433
    %v435 = vmul.f32 %v428, 1.442695
    %v436 = vpow.pop %v435
    %v437 = vmul.f32 %v429, 1.442695
    %v438 = vpow.pop %v437
    %v439 = vmul.f32 %v430, 1.442695
    %v440 = vpow.pop %v439
    %v441 = vmul.f32 %v431, 1.442695
    %v442 = vpow.pop %v441
    %v443 = vmul.f32 %v432, 1.442695
    %v444 = vpow.pop %v443
    %v445 = vadd.f32 %v434, 1.0
    %v446 = vadd.f32 %v436, 1.0
    %v447 = vadd.f32 %v438, 1.0
    %v448 = vadd.f32 %v440, 1.0
    %v449 = vadd.f32 %v442, 1.0
    %v450 = vadd.f32 %v444, 1.0
    %v451 = vrcp.pop %v445
    %v452 = vmul.f32 %v445, %v451
    %v453 = vsub.f32 1.0, %v452
    %v454 = vmul.f32 %v451, %v453
    %v455 = vadd.f32 %v451, %v454
    %vm456 = vweird.f32 %v445
    %vm457 = vweird.f32 %v451
    %vm458 = vmor %vm456, %vm457
    %v459 = vsel %vm458, %v451, %v455
    %v460 = vand.u32 2147483647, %v445
    %vm461 = vcmp.eq.f32.partialorder %v460, 8.507059e+37
    %v462 = vand.u32 %v445, 2147483648
    %v463 = vor.u32 1.1754944e-38, %v462
    %v464 = vsel %vm461, %v463, %v459
    %v465 = vmul.f32 1.0, %v464
    %v466 = vrcp.pop %v446
    %v467 = vmul.f32 %v446, %v466
    %v468 = vsub.f32 1.0, %v467
    %v469 = vmul.f32 %v466, %v468
    %v470 = vadd.f32 %v466, %v469
    %vm471 = vweird.f32 %v446
    %vm472 = vweird.f32 %v466
    %vm473 = vmor %vm471, %vm472
    %v474 = vsel %vm473, %v466, %v470
    %v475 = vand.u32 2147483647, %v446
    %vm476 = vcmp.eq.f32.partialorder %v475, 8.507059e+37
    %v477 = vand.u32 %v446, 2147483648
    %v478 = vor.u32 1.1754944e-38, %v477
    %v479 = vsel %vm476, %v478, %v474
    %v480 = vmul.f32 1.0, %v479
    %v481 = vrcp.pop %v447
    %v482 = vmul.f32 %v447, %v481
    %v483 = vsub.f32 1.0, %v482
    %v484 = vmul.f32 %v481, %v483
    %v485 = vadd.f32 %v481, %v484
    %vm486 = vweird.f32 %v447
    %vm487 = vweird.f32 %v481
    %vm488 = vmor %vm486, %vm487
    %v489 = vsel %vm488, %v481, %v485
    %v490 = vand.u32 2147483647, %v447
    %vm491 = vcmp.eq.f32.partialorder %v490, 8.507059e+37
    %v492 = vand.u32 %v447, 2147483648
    %v493 = vor.u32 1.1754944e-38, %v492
    %v494 = vsel %vm491, %v493, %v489
    %v495 = vmul.f32 1.0, %v494
    %v496 = vrcp.pop %v448
    %v497 = vmul.f32 %v448, %v496
    %v498 = vsub.f32 1.0, %v497
    %v499 = vmul.f32 %v496, %v498
    %v500 = vadd.f32 %v496, %v499
    %vm501 = vweird.f32 %v448
    %vm502 = vweird.f32 %v496
    %vm503 = vmor %vm501, %vm502
    %v504 = vsel %vm503, %v496, %v500
    %v505 = vand.u32 2147483647, %v448
    %vm506 = vcmp.eq.f32.partialorder %v505, 8.507059e+37
    %v507 = vand.u32 %v448, 2147483648
    %v508 = vor.u32 1.1754944e-38, %v507
    %v509 = vsel %vm506, %v508, %v504
    %v510 = vmul.f32 1.0, %v509
    %v511 = vrcp.pop %v449
    %v512 = vmul.f32 %v449, %v511
    %v513 = vsub.f32 1.0, %v512
    %v514 = vmul.f32 %v511, %v513
    %v515 = vadd.f32 %v511, %v514
    %vm516 = vweird.f32 %v449
    %vm517 = vweird.f32 %v511
    %vm518 = vmor %vm516, %vm517
    %v519 = vsel %vm518, %v511, %v515
    %v520 = vand.u32 2147483647, %v449
    %vm521 = vcmp.eq.f32.partialorder %v520, 8.507059e+37
    %v522 = vand.u32 %v449, 2147483648
    %v523 = vor.u32 1.1754944e-38, %v522
    %v524 = vsel %vm521, %v523, %v519
    %v525 = vmul.f32 1.0, %v524
    %v526 = vrcp.pop %v450
    %v527 = vmul.f32 %v450, %v526
    %v528 = vsub.f32 1.0, %v527
    %v529 = vmul.f32 %v526, %v528
    %v530 = vadd.f32 %v526, %v529
    %vm531 = vweird.f32 %v450
    %vm532 = vweird.f32 %v526
    %vm533 = vmor %vm531, %vm532
    %v534 = vsel %vm533, %v526, %v530
    %v535 = vand.u32 2147483647, %v450
    %vm536 = vcmp.eq.f32.partialorder %v535, 8.507059e+37
    %v537 = vand.u32 %v450, 2147483648
    %v538 = vor.u32 1.1754944e-38, %v537
    %v539 = vsel %vm536, %v538, %v534
    %v540 = vmul.f32 1.0, %v539
    %v541 = vpack.c.bf16 %v480, %v465
    %v542 = vpack.c.bf16 %v510, %v495
    %v543 = vpack.c.bf16 %v540, %v525
    %v544 = vld [vmem:[%s5] sm:$0xf]
    %v545 = vld [vmem:[%s5 + $0x4] sm:$0xf]
    %v546 = vld [vmem:[%s5 + $0x8] sm:$0xf]
    %v547 = vld [vmem:[%s5 + $0xc] sm:$0xf]
    %v548 = vld [vmem:[%s5 + $0x10] sm:$0xf]
    %v549 = vld [vmem:[%s5 + $0x14] sm:$0xf]
    %v550 = vld [vmem:[%s5 + $0x18] sm:$0xf]
    %v551 = vld [vmem:[%s5 + $0x1c] sm:$0xf]
    %v552 = vld [vmem:[%s5 + $0x20] sm:$0xf]
    %v553 = vld [vmem:[%s5 + $0x24] sm:$0xf]
    %v554 = vld [vmem:[%s5 + $0x28] sm:$0xf]
    %v555 = vld [vmem:[%s5 + $0x2c] sm:$0xf]
    %v556 = vld [vmem:[%s5 + $0x30] sm:$0xf]
    %v557 = vld [vmem:[%s5 + $0x34] sm:$0xf]
    %v558 = vld [vmem:[%s5 + $0x38] sm:$0xf]
    %v559 = vld [vmem:[%s5 + $0x3c] sm:$0xf]
    %v560 = vld [vmem:[%s6] sm:$0x1]
    %v562 = vperm.slane %v560, 0
    %v580 = vunpack.c.l.b16 %v544
    %v581 = vunpack.c.l.b16 %v545
    %v582 = vunpack.c.l.b16 %v546
    %v583 = vunpack.c.l.b16 %v547
    %v584 = vunpack.c.l.b16 %v548
    %v585 = vunpack.c.l.b16 %v549
    %v586 = vunpack.c.l.b16 %v550
    %v587 = vunpack.c.l.b16 %v551
    %v588 = vunpack.c.l.b16 %v552
    %v589 = vunpack.c.l.b16 %v553
    %v590 = vunpack.c.l.b16 %v554
    %v591 = vunpack.c.l.b16 %v555
    %v592 = vunpack.c.l.b16 %v556
    %v593 = vunpack.c.l.b16 %v557
    %v594 = vunpack.c.l.b16 %v558
    %v595 = vunpack.c.l.b16 %v559
    %v596 = vpack.c.b16 %v581, %v580
    %v597 = vpack.c.b16 %v583, %v582
    %v598 = vpack.c.b16 %v585, %v584
    %v599 = vpack.c.b16 %v587, %v586
    %v600 = vpack.c.b16 %v589, %v588
    %v601 = vpack.c.b16 %v591, %v590
    %v602 = vpack.c.b16 %v593, %v592
    %v603 = vpack.c.b16 %v595, %v594
    %612 = vmatpush.bf16.msra.mxu0 %v603
    %613 = vmatpush.bf16.msra.mxu0 %v602
    %614 = vmatpush.bf16.msra.mxu0 %v601
    %615 = vmatpush.bf16.msra.mxu0 %v600
    %616 = vmatpush.bf16.msra.mxu0 %v599
    %617 = vmatpush.bf16.msra.mxu0 %v598
    %618 = vmatpush.bf16.msra.mxu0 %v597
    %619 = vmatpush.bf16.msra.mxu0 %v596
    %620 = vmatmul.bf16.gmra.mxu0 %v541
    %v621 = vpop.f32.mrf.mxu0
    %v622 = vadd.f32 %v562, %v621
    %v623 = vpop.f32.mrf.mxu0
    %v624 = vadd.f32 %v562, %v623
    %625 = vmatmul.bf16.gmra.mxu0 %v542
    %v626 = vpop.f32.mrf.mxu0
    %v627 = vadd.f32 %v562, %v626
    %v628 = vpop.f32.mrf.mxu0
    %v629 = vadd.f32 %v562, %v628
    %630 = vmatmul.bf16.gmra.mxu0 %v543
    %v631 = vpop.f32.mrf.mxu0
    %v632 = vadd.f32 %v562, %v631
    %v633 = vpop.f32.mrf.mxu0
    %v634 = vadd.f32 %v562, %v633
    %635 = vdwg.mxu0
    %v636 = vpack.c.bf16 %v622, %v622
    %v637 = vpack.c.bf16 %v624, %v624
    %v638 = vpack.c.bf16 %v627, %v627
    %v639 = vpack.c.bf16 %v629, %v629
    %v640 = vpack.c.bf16 %v632, %v632
    %v641 = vpack.c.bf16 %v634, %v634
    %642 = vst [vmem:[%s7] sm:$0xf] %v636
    %643 = vst [vmem:[%s7 + $0x4] sm:$0xf] %v637
    %644 = vst [vmem:[%s7 + $0x8] sm:$0xf] %v638
    %645 = vst [vmem:[%s7 + $0xc] sm:$0xf] %v639
    %646 = vst [vmem:[%s7 + $0x10] sm:$0xf] %v640
    %647 = vst [vmem:[%s7 + $0x14] sm:$0xf] %v641
    // Predicated region
    $region38: #{metabolomics_classifier_forward.1} parent=1 // pred_check
      _
    $region39: #{metabolomics_classifier_forward.1} parent=1 // pred_check_branch
      %649 = sbr.rel (0) target = $region41
    $region40: #{metabolomics_classifier_forward.1} parent=1 // pred_region
      _
    $region41: #{metabolomics_classifier_forward.1} parent=1 // pred_fallthru
      _
    // Predicated region
    $region42: #{metabolomics_classifier_forward.1} parent=1 // pred_check
      _
    $region43: #{metabolomics_classifier_forward.1} parent=1 // pred_check_branch
      %651 = sbr.rel (0) target = $region45
    $region44: #{metabolomics_classifier_forward.1} parent=1 // pred_region
      _
    $region45: #{metabolomics_classifier_forward.1} parent=1 // pred_fallthru
      _
    %652 = vsyncpa [#allocation3], 1
    %653 = vsyncpa [#allocation5], 1

</llo_original>
